<compile_context>
chip_gen: v7x
topology: tpu7x:2x2x1
jax: 0.10.0
libtpu: 0.0.40
codegen_flags: <defaults>
</compile_context>

<pallas_src>
import functools

import jax
import jax.numpy as jnp
from jax.experimental import pallas as pl
from jax.experimental.pallas import tpu as pltpu

_LANE = 128
_SUBLANE = 8
_FALLBACK_VMEM_BYTES = 64 * 1024 * 1024  # v7x per-TC VMEM (smallest generation)


def _vmem_capacity_bytes():
    try:
        return int(pltpu.get_tpu_info().vmem_capacity_bytes)
    except Exception:
        return _FALLBACK_VMEM_BYTES


def _largest_divisor_leq(n, cap):
    cap = max(1, min(n, cap))
    for d in range(cap, 0, -1):
        if n % d == 0:
            return d
    return 1


def _make_kernel(hw, spatial_block, needs_mask, n_sp):
    """spatial_block: (R, 128) for the 2-D spatial view, (tl,) for the 1-D view."""
    sp_elems = 1
    for d in spatial_block:
        sp_elems *= int(d)
    rank2 = len(spatial_block) == 2

    def kernel(pred_ref, target_ref, cos_out, mse_out, cos_acc, mse_acc):
        j = pl.program_id(1)

        @pl.when(j == 0)
        def _():
            cos_acc[...] = jnp.zeros_like(cos_acc)
            mse_acc[...] = jnp.zeros_like(mse_acc)

        # Block: (bb, C, R, 128) or (bb, C, tl). Channel axis is axis 1.
        p = pred_ref[...].astype(jnp.float32)
        t = target_ref[...].astype(jnp.float32)

        # --- Cosine embedding term (per spatial location, reduce over C) ---
        dot = jnp.sum(p * t, axis=1)
        pp = jnp.sum(p * p, axis=1)
        tt = jnp.sum(t * t, axis=1)
        # max(pp*tt, 1e-16) == max(|p|*|t|, 1e-8)**2 ; single EUP rsqrt.
        cos = dot * jax.lax.rsqrt(jnp.maximum(pp * tt, 1e-16))
        cos_term = 1.0 - cos

        # --- MSE on min/max-normalized values ---
        # (p-min)/s - (t-min)/s == (p-t)/s ; apply 1/s^2 AFTER the C-reduction
        # so the scale lives on the per-location domain only.
        t_min = jnp.min(t, axis=1)
        t_max = jnp.max(t, axis=1)
        inv_scale = 1.0 / (t_max - t_min + 1e-6)
        diff = p - t
        ss = jnp.sum(diff * diff, axis=1)
        mse_term = ss * (inv_scale * inv_scale)

        if needs_mask:
            # Mask only the per-location partials; garbage (even NaN/Inf) in
            # invalid positions is discarded by the select.
            if rank2:
                r_, l_ = spatial_block
                flat = (jax.lax.broadcasted_iota(jnp.int32, (r_, l_), 0) * l_
                        + jax.lax.broadcasted_iota(jnp.int32, (r_, l_), 1))
            else:
                flat = jax.lax.broadcasted_iota(
                    jnp.int32, (1, spatial_block[0]), 1)
            valid = (j * sp_elems + flat) < hw
            cos_term = jnp.where(valid, cos_term, 0.0)
            mse_term = jnp.where(valid, mse_term, 0.0)

        if rank2:
            cos_acc[...] += jnp.sum(cos_term, axis=0)              # (R, 128)
            mse_acc[...] += jnp.sum(mse_term, axis=0)
        else:
            cos_acc[...] += jnp.sum(cos_term, axis=0, keepdims=True)  # (1, tl)
            mse_acc[...] += jnp.sum(mse_term, axis=0, keepdims=True)

        @pl.when(j == n_sp - 1)
        def _():
            c_tot = jnp.sum(jnp.sum(cos_acc[...], axis=-1, keepdims=True),
                            axis=0, keepdims=True)                  # (1, 1)
            m_tot = jnp.sum(jnp.sum(mse_acc[...], axis=-1, keepdims=True),
                            axis=0, keepdims=True)
            cos_out[...] = c_tot.reshape(1, 1, 1)
            mse_out[...] = m_tot.reshape(1, 1, 1)

    return kernel


@functools.partial(jax.jit, static_argnames=("max_positions_per_step",))
def cosine_mse_loss(pred, target, max_positions_per_step=None):
    """pred, target: (B, C, H, W). Returns scalar f32 loss."""
    B, C, H, W = pred.shape
    HW = H * W
    itemsize = jnp.dtype(pred.dtype).itemsize

    vmem_cap = _vmem_capacity_bytes()
    # Per-spatial-position VMEM cost: 2 inputs x 2 pipeline buffers (input
    # dtype) + ~4 f32 cast/intermediate copies over the C axis + per-location
    # temporaries and the two f32 accumulator vectors. Target ~half of VMEM.
    bytes_per_pos = C * (4 * itemsize + 16) + 48
    s_budget = max(_LANE, (vmem_cap // 2) // bytes_per_pos)
    if max_positions_per_step is not None:
        s_budget = max(_LANE, int(max_positions_per_step))

    if HW % _LANE == 0:
        # 2-D spatial view: (B, C, HW//128, 128); channel reductions become
        # full-vreg VPU adds (no sublane underfill for small C).
        nr = HW // _LANE
        rows_budget = max(_SUBLANE, (s_budget // _LANE) // _SUBLANE * _SUBLANE)
        if nr <= rows_budget:
            r = nr
            bb = _largest_divisor_leq(B, rows_budget // nr)   # fold batches
        else:
            r = rows_budget
            bb = 1
        n_sp = pl.cdiv(nr, r)
        needs_mask = (n_sp * r) != nr
        view_shape = (B, C, nr, _LANE)
        block_shape = (bb, C, r, _LANE)
        idx_map = lambda bi, j: (bi, 0, j, 0)
        spatial_block = (r, _LANE)
    else:
        # Fallback lane layout: spatial on lanes, channels on sublanes.
        tl_budget = max(_LANE, (s_budget // _LANE) * _LANE)
        if HW <= tl_budget:
            tl = HW
            bb = _largest_divisor_leq(B, max(1, s_budget // HW))  # fold batches
        else:
            tl = tl_budget
            bb = 1
        n_sp = pl.cdiv(HW, tl)
        needs_mask = (n_sp * tl) != HW
        view_shape = (B, C, HW)
        block_shape = (bb, C, tl)
        idx_map = lambda bi, j: (bi, 0, j)
        spatial_block = (tl,)

    nb = B // bb                      # bb divides B by construction
    p = pred.reshape(view_shape)      # free views, no extra HBM pass
    t = target.reshape(view_shape)

    kernel = _make_kernel(HW, spatial_block, needs_mask, n_sp)
    acc_shape = spatial_block if len(spatial_block) == 2 else (1, spatial_block[0])

    cos_part, mse_part = pl.pallas_call(
        kernel,
        out_shape=(jax.ShapeDtypeStruct((nb, 1, 1), jnp.float32),
                   jax.ShapeDtypeStruct((nb, 1, 1), jnp.float32)),
        grid_spec=pltpu.PrefetchScalarGridSpec(
            num_scalar_prefetch=0,
            grid=(nb, n_sp),
            in_specs=[pl.BlockSpec(block_shape, idx_map),
                      pl.BlockSpec(block_shape, idx_map)],
            out_specs=[pl.BlockSpec((1, 1, 1), lambda bi, j: (bi, 0, 0)),
                       pl.BlockSpec((1, 1, 1), lambda bi, j: (bi, 0, 0))],
            scratch_shapes=[pltpu.VMEM(acc_shape, jnp.float32),
                            pltpu.VMEM(acc_shape, jnp.float32)],
        ),
        compiler_params=pltpu.CompilerParams(
            # Batch-block axis is race-free (per-block outputs + per-block
            # scratch reset/finalize) -> shard across TensorCores on v7x.
            dimension_semantics=("parallel", "arbitrary"),
            vmem_limit_bytes=int(vmem_cap * 3 // 4),
        ),
    )(p, t)

    cos_mean = jnp.sum(cos_part) / (B * HW)
    mse_mean = jnp.sum(mse_part) / (B * HW * C)
    return cos_mean + mse_mean


def _reference(pred, target):
    """Pure-JAX reference mirroring the PyTorch module."""
    B, C, H, W = pred.shape
    p = jnp.transpose(pred, (0, 2, 3, 1)).reshape(-1, C).astype(jnp.float32)
    t = jnp.transpose(target, (0, 2, 3, 1)).reshape(-1, C).astype(jnp.float32)
    dot = jnp.sum(p * t, axis=1)
    denom = jnp.maximum(
        jnp.linalg.norm(p, axis=1) * jnp.linalg.norm(t, axis=1), 1e-8)
    cos_loss = jnp.mean(1.0 - dot / denom)
    t_min = jnp.min(t, axis=1, keepdims=True)
    t_max = jnp.max(t, axis=1, keepdims=True)
    pn = (p - t_min) / (t_max - t_min + 1e-6)
    tn = (t - t_min) / (t_max - t_min + 1e-6)
    mse = jnp.mean((pn - tn) ** 2)
    return cos_loss + mse


if __name__ == "__main__":
    key = jax.random.PRNGKey(0)
    keys = jax.random.split(key, 6)

    # Case 1: standard small shape; HW % 128 == 0 -> 2-D spatial view,
    # batch-folded into a single grid step.
    pred1 = jax.random.normal(keys[0], (2, 4, 16, 16), dtype=jnp.float32)
    targ1 = jax.random.normal(keys[1], (2, 4, 16, 16), dtype=jnp.float32)
    out1 = jax.block_until_ready(cosine_mse_loss(pred1, targ1))
    ref1 = jax.block_until_ready(_reference(pred1, targ1))
    assert jnp.allclose(out1, ref1, rtol=2e-3, atol=1e-4), (out1, ref1)

    # Case 2: HW not a multiple of 128 + tiny forced tile -> lane-layout
    # fallback, multi-tile spatial loop, remainder mask, per-batch partials.
    pred2 = jax.random.normal(keys[2], (2, 4, 18, 18), dtype=jnp.float32)
    targ2 = jax.random.normal(keys[3], (2, 4, 18, 18), dtype=jnp.float32)
    out2 = jax.block_until_ready(
        cosine_mse_loss(pred2, targ2, max_positions_per_step=128))
    ref2 = jax.block_until_ready(_reference(pred2, targ2))
    assert jnp.allclose(out2, ref2, rtol=2e-3, atol=1e-4), (out2, ref2)

    # Case 3: HW % 128 == 0 with a row remainder (9 rows, R=8) -> 2-D view
    # with in-kernel row mask and a 2-step spatial loop per image.
    pred3 = jax.random.normal(keys[4], (2, 4, 32, 36), dtype=jnp.float32)
    targ3 = jax.random.normal(keys[5], (2, 4, 32, 36), dtype=jnp.float32)
    out3 = jax.block_until_ready(
        cosine_mse_loss(pred3, targ3, max_positions_per_step=1024))
    ref3 = jax.block_until_ready(_reference(pred3, targ3))
    assert jnp.allclose(out3, ref3, rtol=2e-3, atol=1e-4), (out3, ref3)

    print("KERNEL_OK")
</pallas_src>

<mosaic_0001>
module attributes {stable_mosaic.version = 11 : i64} {
  func.func @kernel(%arg0: i32, %arg1: i32, %arg2: memref<2x4x2x128xf32, #tpu.memory_space<vmem>>, %arg3: memref<2x4x2x128xf32, #tpu.memory_space<vmem>>, %arg4: memref<1x1x1xf32, #tpu.memory_space<vmem>>, %arg5: memref<1x1x1xf32, #tpu.memory_space<vmem>>, %arg6: memref<2x128xf32, #tpu.memory_space<vmem>>, %arg7: memref<2x128xf32, #tpu.memory_space<vmem>>) attributes {dimension_semantics = [#tpu.dimension_semantics<parallel>, #tpu.dimension_semantics<arbitrary>], iteration_bounds = array<i64: 1, 1>, scalar_prefetch = 0 : i64, scratch_operands = 2 : i64, tpu.core_type = #tpu.core_type<tc>, window_params = [{transform_indices = @transform_0, window_bounds = array<i64: 2, 4, 2, 128>}, {transform_indices = @transform_1, window_bounds = array<i64: 2, 4, 2, 128>}, {transform_indices = @transform_2, window_bounds = array<i64: 1, 1, 1>}, {transform_indices = @transform_3, window_bounds = array<i64: 1, 1, 1>}]} {
    %c0_i32 = arith.constant 0 : i32
    %0 = arith.cmpi eq, %arg1, %c0_i32 : i32
    %1 = arith.extui %0 : i1 to i32
    %c0_i32_0 = arith.constant 0 : i32
    %2 = arith.cmpi ne, %1, %c0_i32_0 : i32
    scf.if %2 {
      %cst_29 = arith.constant 0.000000e+00 : f32
      %41 = vector.broadcast %cst_29 : f32 to vector<2x128xf32>
      %c0_30 = arith.constant 0 : index
      %c0_31 = arith.constant 0 : index
      %42 = vector.load %arg6[%c0_30, %c0_31] : memref<2x128xf32, #tpu.memory_space<vmem>>, vector<2x128xf32>
      tpu.vector_store %arg6[%c0_30, %c0_31], %41 {strides = array<i32>} : memref<2x128xf32, #tpu.memory_space<vmem>>, vector<2x128xf32>,
      %cst_32 = arith.constant 0.000000e+00 : f32
      %43 = vector.broadcast %cst_32 : f32 to vector<2x128xf32>
      %c0_33 = arith.constant 0 : index
      %c0_34 = arith.constant 0 : index
      %44 = vector.load %arg7[%c0_33, %c0_34] : memref<2x128xf32, #tpu.memory_space<vmem>>, vector<2x128xf32>
      tpu.vector_store %arg7[%c0_33, %c0_34], %43 {strides = array<i32>} : memref<2x128xf32, #tpu.memory_space<vmem>>, vector<2x128xf32>,
    } else {
    }
    %c0 = arith.constant 0 : index
    %c0_1 = arith.constant 0 : index
    %c0_2 = arith.constant 0 : index
    %c0_3 = arith.constant 0 : index
    %3 = vector.load %arg2[%c0, %c0_1, %c0_2, %c0_3] : memref<2x4x2x128xf32, #tpu.memory_space<vmem>>, vector<2x4x2x128xf32>
    %c0_4 = arith.constant 0 : index
    %c0_5 = arith.constant 0 : index
    %c0_6 = arith.constant 0 : index
    %c0_7 = arith.constant 0 : index
    %4 = vector.load %arg3[%c0_4, %c0_5, %c0_6, %c0_7] : memref<2x4x2x128xf32, #tpu.memory_space<vmem>>, vector<2x4x2x128xf32>
    %5 = arith.mulf %3, %4 : vector<2x4x2x128xf32>
    %cst = arith.constant dense<0.000000e+00> : vector<2x2x128xf32>
    %6 = vector.multi_reduction <add>, %5, %cst [1] : vector<2x4x2x128xf32> to vector<2x2x128xf32>
    %7 = arith.mulf %3, %3 : vector<2x4x2x128xf32>
    %cst_8 = arith.constant dense<0.000000e+00> : vector<2x2x128xf32>
    %8 = vector.multi_reduction <add>, %7, %cst_8 [1] : vector<2x4x2x128xf32> to vector<2x2x128xf32>
    %9 = arith.mulf %4, %4 : vector<2x4x2x128xf32>
    %cst_9 = arith.constant dense<0.000000e+00> : vector<2x2x128xf32>
    %10 = vector.multi_reduction <add>, %9, %cst_9 [1] : vector<2x4x2x128xf32> to vector<2x2x128xf32>
    %11 = arith.mulf %8, %10 : vector<2x2x128xf32>
    %cst_10 = arith.constant 1.000000e-16 : f32
    %12 = vector.broadcast %cst_10 : f32 to vector<2x2x128xf32>
    %13 = arith.maximumf %11, %12 : vector<2x2x128xf32>
    %14 = math.rsqrt %13 : vector<2x2x128xf32>
    %15 = arith.mulf %6, %14 : vector<2x2x128xf32>
    %cst_11 = arith.constant 1.000000e+00 : f32
    %16 = vector.broadcast %cst_11 : f32 to vector<2x2x128xf32>
    %17 = arith.subf %16, %15 : vector<2x2x128xf32>
    %cst_12 = arith.constant dense<0x7F800000> : vector<2x2x128xf32>
    %18 = vector.multi_reduction <minimumf>, %4, %cst_12 [1] : vector<2x4x2x128xf32> to vector<2x2x128xf32>
    %cst_13 = arith.constant dense<0xFF800000> : vector<2x2x128xf32>
    %19 = vector.multi_reduction <maximumf>, %4, %cst_13 [1] : vector<2x4x2x128xf32> to vector<2x2x128xf32>
    %20 = arith.subf %19, %18 : vector<2x2x128xf32>
    %cst_14 = arith.constant 9.99999997E-7 : f32
    %21 = vector.broadcast %cst_14 : f32 to vector<2x2x128xf32>
    %22 = arith.addf %20, %21 : vector<2x2x128xf32>
    %cst_15 = arith.constant 1.000000e+00 : f32
    %23 = vector.broadcast %cst_15 : f32 to vector<2x2x128xf32>
    %24 = arith.divf %23, %22 : vector<2x2x128xf32>
    %25 = arith.subf %3, %4 : vector<2x4x2x128xf32>
    %26 = arith.mulf %25, %25 : vector<2x4x2x128xf32>
    %cst_16 = arith.constant dense<0.000000e+00> : vector<2x2x128xf32>
    %27 = vector.multi_reduction <add>, %26, %cst_16 [1] : vector<2x4x2x128xf32> to vector<2x2x128xf32>
    %28 = arith.mulf %24, %24 : vector<2x2x128xf32>
    %29 = arith.mulf %27, %28 : vector<2x2x128xf32>
    %c0_17 = arith.constant 0 : index
    %c0_18 = arith.constant 0 : index
    %30 = vector.load %arg6[%c0_17, %c0_18] : memref<2x128xf32, #tpu.memory_space<vmem>>, vector<2x128xf32>
    %cst_19 = arith.constant dense<0.000000e+00> : vector<2x128xf32>
    %31 = vector.multi_reduction <add>, %17, %cst_19 [0] : vector<2x2x128xf32> to vector<2x128xf32>
    %32 = arith.addf %30, %31 : vector<2x128xf32>
    %c0_20 = arith.constant 0 : index
    %c0_21 = arith.constant 0 : index
    %33 = vector.load %arg6[%c0_20, %c0_21] : memref<2x128xf32, #tpu.memory_space<vmem>>, vector<2x128xf32>
    tpu.vector_store %arg6[%c0_20, %c0_21], %32 {strides = array<i32>} : memref<2x128xf32, #tpu.memory_space<vmem>>, vector<2x128xf32>,
    %c0_22 = arith.constant 0 : index
    %c0_23 = arith.constant 0 : index
    %34 = vector.load %arg7[%c0_22, %c0_23] : memref<2x128xf32, #tpu.memory_space<vmem>>, vector<2x128xf32>
    %cst_24 = arith.constant dense<0.000000e+00> : vector<2x128xf32>
    %35 = vector.multi_reduction <add>, %29, %cst_24 [0] : vector<2x2x128xf32> to vector<2x128xf32>
    %36 = arith.addf %34, %35 : vector<2x128xf32>
    %c0_25 = arith.constant 0 : index
    %c0_26 = arith.constant 0 : index
    %37 = vector.load %arg7[%c0_25, %c0_26] : memref<2x128xf32, #tpu.memory_space<vmem>>, vector<2x128xf32>
    tpu.vector_store %arg7[%c0_25, %c0_26], %36 {strides = array<i32>} : memref<2x128xf32, #tpu.memory_space<vmem>>, vector<2x128xf32>,
    %c0_i32_27 = arith.constant 0 : i32
    %38 = arith.cmpi eq, %arg1, %c0_i32_27 : i32
    %39 = arith.extui %38 : i1 to i32
    %c0_i32_28 = arith.constant 0 : i32
    %40 = arith.cmpi ne, %39, %c0_i32_28 : i32
    scf.if %40 {
      %c0_29 = arith.constant 0 : index
      %c0_30 = arith.constant 0 : index
      %41 = vector.load %arg6[%c0_29, %c0_30] : memref<2x128xf32, #tpu.memory_space<vmem>>, vector<2x128xf32>
      %cst_31 = arith.constant dense<0.000000e+00> : vector<2xf32>
      %42 = vector.multi_reduction <add>, %41, %cst_31 [1] : vector<2x128xf32> to vector<2xf32>
      %43 = vector.shape_cast %42 : vector<2xf32> to vector<2x1xf32>
      %cst_32 = arith.constant dense<0.000000e+00> : vector<1xf32>
      %44 = vector.multi_reduction <add>, %43, %cst_32 [0] : vector<2x1xf32> to vector<1xf32>
      %45 = vector.shape_cast %44 : vector<1xf32> to vector<1x1xf32>
      %c0_33 = arith.constant 0 : index
      %c0_34 = arith.constant 0 : index
      %46 = vector.load %arg7[%c0_33, %c0_34] : memref<2x128xf32, #tpu.memory_space<vmem>>, vector<2x128xf32>
      %cst_35 = arith.constant dense<0.000000e+00> : vector<2xf32>
      %47 = vector.multi_reduction <add>, %46, %cst_35 [1] : vector<2x128xf32> to vector<2xf32>
      %48 = vector.shape_cast %47 : vector<2xf32> to vector<2x1xf32>
      %cst_36 = arith.constant dense<0.000000e+00> : vector<1xf32>
      %49 = vector.multi_reduction <add>, %48, %cst_36 [0] : vector<2x1xf32> to vector<1xf32>
      %50 = vector.shape_cast %49 : vector<1xf32> to vector<1x1xf32>
      %51 = vector.shape_cast %45 : vector<1x1xf32> to vector<1x1x1xf32>
      %c0_37 = arith.constant 0 : index
      %c0_38 = arith.constant 0 : index
      %c0_39 = arith.constant 0 : index
      %52 = vector.load %arg4[%c0_37, %c0_38, %c0_39] : memref<1x1x1xf32, #tpu.memory_space<vmem>>, vector<1x1x1xf32>
      tpu.vector_store %arg4[%c0_37, %c0_38, %c0_39], %51 {strides = array<i32>} : memref<1x1x1xf32, #tpu.memory_space<vmem>>, vector<1x1x1xf32>,
      %53 = vector.shape_cast %50 : vector<1x1xf32> to vector<1x1x1xf32>
      %c0_40 = arith.constant 0 : index
      %c0_41 = arith.constant 0 : index
      %c0_42 = arith.constant 0 : index
      %54 = vector.load %arg5[%c0_40, %c0_41, %c0_42] : memref<1x1x1xf32, #tpu.memory_space<vmem>>, vector<1x1x1xf32>
      tpu.vector_store %arg5[%c0_40, %c0_41, %c0_42], %53 {strides = array<i32>} : memref<1x1x1xf32, #tpu.memory_space<vmem>>, vector<1x1x1xf32>,
    } else {
    }
    return
  }
  func.func @transform_0(%arg0: i32, %arg1: i32) -> (i32, i32, i32, i32) {
    %c0_i32 = arith.constant 0 : i32
    %c0_i32_0 = arith.constant 0 : i32
    %c0_i32_1 = arith.constant 0 : i32
    return %arg0, %c0_i32, %arg1, %c0_i32_0 : i32, i32, i32, i32
  }
  func.func @transform_1(%arg0: i32, %arg1: i32) -> (i32, i32, i32, i32) {
    %c0_i32 = arith.constant 0 : i32
    %c0_i32_0 = arith.constant 0 : i32
    %c0_i32_1 = arith.constant 0 : i32
    return %arg0, %c0_i32, %arg1, %c0_i32_0 : i32, i32, i32, i32
  }
  func.func @transform_2(%arg0: i32, %arg1: i32) -> (i32, i32, i32) {
    %c0_i32 = arith.constant 0 : i32
    %c0_i32_0 = arith.constant 0 : i32
    %c0_i32_1 = arith.constant 0 : i32
    return %arg0, %c0_i32, %c0_i32_0 : i32, i32, i32
  }
  func.func @transform_3(%arg0: i32, %arg1: i32) -> (i32, i32, i32) {
    %c0_i32 = arith.constant 0 : i32
    %c0_i32_0 = arith.constant 0 : i32
    %c0_i32_1 = arith.constant 0 : i32
    return %arg0, %c0_i32, %c0_i32_0 : i32, i32, i32
  }
}

</mosaic_0001>

<llo_original>
// kernel: cosine_mse_loss.1
$region0: #{cosine_mse_loss.1}
  #allocation0 [shape = 'u32[]', space=smem, size = 0x4, offset = 0x4, fixed_abs, tag = 'smem constant byte address 0x4 - core index']
  #allocation1 [shape = 'u32[144,128]{1,0:T(1,128)}', space=vmem, size = 0x12000, scoped, tag = 'internal scratch']
  #allocation2 [shape = 'f32[2,128]{1,0:T(2,128)}', space=vmem, size = 0x400, scoped, tag = 'scratch operand']
  #allocation3 [shape = 'f32[2,128]{1,0:T(2,128)}', space=vmem, size = 0x400, scoped, tag = 'scratch operand']
  %s0 = inlined_call_operand.vmem [shape: f32[2,4,2,128], index: 0, kind: input, shape index: {}]
  %s1 = inlined_call_operand.vmem [shape: f32[2,4,2,128], index: 1, kind: input, shape index: {}]
  %s2 = inlined_call_operand.hbm [shape: f32[1,1,1], index: 2, kind: output, shape index: {0}]
  %s3 = inlined_call_operand.hbm [shape: f32[1,1,1], index: 3, kind: output, shape index: {1}]
  %4 = xla_tuple %s2, %s3
  %s5 = sld [smem:[#allocation0]]
  $region34: #{cosine_mse_loss.1} parent=0
    _
  %s7 = ssub.s32 1, %s5
  %s8 = scalar_select 0, %s7, %s5
  $region1: #{cosine_mse_loss.1} parent=0
    #allocation4 [shape = 'u8[512]{0}', space=vmem, size = 0x400, scoped, tag = 'output window, operand 0, single buffered']
    #allocation5 [shape = 's32[1]{0}', space=sflag, size = 0x4, scoped, tag = 'scoped memory for cosine_mse_loss.1']
    #allocation6 [shape = 'u8[512]{0}', space=vmem, size = 0x400, scoped, tag = 'output window, operand 1, single buffered']
    #allocation7 [shape = 's32[1]{0}', space=sflag, size = 0x4, scoped, tag = 'scoped memory for cosine_mse_loss.1']
    %9 = vsyncpa [#allocation5], 0
    %10 = vsyncpa [#allocation7], 0
    // Predicated region
    $region2: #{cosine_mse_loss.1} parent=1 // pred_check
      _
    $region3: #{cosine_mse_loss.1} parent=1 // pred_check_branch
      %12 = sbr.rel (0) target = $region5
    $region4: #{cosine_mse_loss.1} parent=1 // pred_region
      _
    $region5: #{cosine_mse_loss.1} parent=1 // pred_fallthru
      _
    // Predicated region
    $region6: #{cosine_mse_loss.1} parent=1 // pred_check
      _
    $region7: #{cosine_mse_loss.1} parent=1 // pred_check_branch
      %14 = sbr.rel (0) target = $region9
    $region8: #{cosine_mse_loss.1} parent=1 // pred_region
      _
    $region9: #{cosine_mse_loss.1} parent=1 // pred_fallthru
      _
    %p15 = scmp.eq.s32.totalorder 0, 0
    // Predicated region
    $region10: #{cosine_mse_loss.1} parent=1 // pred_check
      %p16 = pneg %p15
    $region11: #{cosine_mse_loss.1} parent=1 // pred_check_branch
      %18 = sbr.rel (%p16) target = $region13
    $region12: #{cosine_mse_loss.1} parent=1 // pred_region
      %19 = vst [vmem:[#allocation2] sm:$0x3] 0.0
      %20 = vst [vmem:[#allocation3] sm:$0x3] 0.0
    $region13: #{cosine_mse_loss.1} parent=1 // pred_fallthru
      _
    %v21 = vld [vmem:[%s0] sm:$0x3]
    %v22 = vld [vmem:[%s0 + $0x2] sm:$0x3]
    %v23 = vld [vmem:[%s0 + $0x4] sm:$0x3]
    %v24 = vld [vmem:[%s0 + $0x6] sm:$0x3]
    %v25 = vld [vmem:[%s0 + $0x8] sm:$0x3]
    %v26 = vld [vmem:[%s0 + $0xa] sm:$0x3]
    %v27 = vld [vmem:[%s0 + $0xc] sm:$0x3]
    %v28 = vld [vmem:[%s0 + $0xe] sm:$0x3]
    %v29 = vld [vmem:[%s1] sm:$0x3]
    %v30 = vld [vmem:[%s1 + $0x2] sm:$0x3]
    %v31 = vld [vmem:[%s1 + $0x4] sm:$0x3]
    %v32 = vld [vmem:[%s1 + $0x6] sm:$0x3]
    %v33 = vld [vmem:[%s1 + $0x8] sm:$0x3]
    %v34 = vld [vmem:[%s1 + $0xa] sm:$0x3]
    %v35 = vld [vmem:[%s1 + $0xc] sm:$0x3]
    %v36 = vld [vmem:[%s1 + $0xe] sm:$0x3]
    %v37 = vmul.f32 %v21, %v29
    %v38 = vmul.f32 %v22, %v30
    %v39 = vmul.f32 %v23, %v31
    %v40 = vmul.f32 %v24, %v32
    %v41 = vmul.f32 %v25, %v33
    %v42 = vmul.f32 %v26, %v34
    %v43 = vmul.f32 %v27, %v35
    %v44 = vmul.f32 %v28, %v36
    %vm45 = vcmask 1041408
    %v46 = vsel %vm45, %v37, 0.0
    %v47 = vsel %vm45, %v38, 0.0
    %v48 = vadd.f32 %v46, %v47
    %v49 = vsel %vm45, %v39, 0.0
    %v50 = vadd.f32 %v48, %v49
    %v51 = vsel %vm45, %v40, 0.0
    %v52 = vadd.f32 %v50, %v51
    %v53 = vsel %vm45, %v41, 0.0
    %v54 = vsel %vm45, %v42, 0.0
    %v55 = vadd.f32 %v53, %v54
    %v56 = vsel %vm45, %v43, 0.0
    %v57 = vadd.f32 %v55, %v56
    %v58 = vsel %vm45, %v44, 0.0
    %v59 = vadd.f32 %v57, %v58
    %v60 = vmul.f32 %v21, %v21
    %v61 = vmul.f32 %v22, %v22
    %v62 = vmul.f32 %v23, %v23
    %v63 = vmul.f32 %v24, %v24
    %v64 = vmul.f32 %v25, %v25
    %v65 = vmul.f32 %v26, %v26
    %v66 = vmul.f32 %v27, %v27
    %v67 = vmul.f32 %v28, %v28
    %v68 = vsel %vm45, %v60, 0.0
    %v69 = vsel %vm45, %v61, 0.0
    %v70 = vadd.f32 %v68, %v69
    %v71 = vsel %vm45, %v62, 0.0
    %v72 = vadd.f32 %v70, %v71
    %v73 = vsel %vm45, %v63, 0.0
    %v74 = vadd.f32 %v72, %v73
    %v75 = vsel %vm45, %v64, 0.0
    %v76 = vsel %vm45, %v65, 0.0
    %v77 = vadd.f32 %v75, %v76
    %v78 = vsel %vm45, %v66, 0.0
    %v79 = vadd.f32 %v77, %v78
    %v80 = vsel %vm45, %v67, 0.0
    %v81 = vadd.f32 %v79, %v80
    %v82 = vmul.f32 %v29, %v29
    %v83 = vmul.f32 %v30, %v30
    %v84 = vmul.f32 %v31, %v31
    %v85 = vmul.f32 %v32, %v32
    %v86 = vmul.f32 %v33, %v33
    %v87 = vmul.f32 %v34, %v34
    %v88 = vmul.f32 %v35, %v35
    %v89 = vmul.f32 %v36, %v36
    %v90 = vsel %vm45, %v82, 0.0
    %v91 = vsel %vm45, %v83, 0.0
    %v92 = vadd.f32 %v90, %v91
    %v93 = vsel %vm45, %v84, 0.0
    %v94 = vadd.f32 %v92, %v93
    %v95 = vsel %vm45, %v85, 0.0
    %v96 = vadd.f32 %v94, %v95
    %v97 = vsel %vm45, %v86, 0.0
    %v98 = vsel %vm45, %v87, 0.0
    %v99 = vadd.f32 %v97, %v98
    %v100 = vsel %vm45, %v88, 0.0
    %v101 = vadd.f32 %v99, %v100
    %v102 = vsel %vm45, %v89, 0.0
    %v103 = vadd.f32 %v101, %v102
    %v104 = vmul.f32 %v74, %v96
    %v105 = vmul.f32 %v81, %v103
    %v106 = vmax.f32 %v104, 1e-16
    %v107 = vmax.f32 %v105, 1e-16
    %v108 = vrsqrt.pop %v106
    %v109 = vrsqrt.pop %v107
    %v110 = vmul.f32 %v52, %v108
    %v111 = vmul.f32 %v59, %v109
    %v112 = vsub.f32 1.0, %v110
    %v113 = vsub.f32 1.0, %v111
    %v114 = vsel %vm45, %v29, inf
    %v115 = vsel %vm45, %v30, inf
    %v116 = vsel %vm45, %v31, inf
    %v117 = vmin.f32 %v114, %v116
    %v118 = vsel %vm45, %v32, inf
    %v119 = vmin.f32 %v115, %v118
    %v120 = vmin.f32 %v117, %v119
    %v121 = vsel %vm45, %v33, inf
    %v122 = vsel %vm45, %v34, inf
    %v123 = vsel %vm45, %v35, inf
    %v124 = vmin.f32 %v121, %v123
    %v125 = vsel %vm45, %v36, inf
    %v126 = vmin.f32 %v122, %v125
    %v127 = vmin.f32 %v124, %v126
    %v128 = vsel %vm45, %v29, -inf
    %v129 = vsel %vm45, %v30, -inf
    %v130 = vsel %vm45, %v31, -inf
    %v131 = vmax.f32 %v128, %v130
    %v132 = vsel %vm45, %v32, -inf
    %v133 = vmax.f32 %v129, %v132
    %v134 = vmax.f32 %v131, %v133
    %v135 = vsel %vm45, %v33, -inf
    %v136 = vsel %vm45, %v34, -inf
    %v137 = vsel %vm45, %v35, -inf
    %v138 = vmax.f32 %v135, %v137
    %v139 = vsel %vm45, %v36, -inf
    %v140 = vmax.f32 %v136, %v139
    %v141 = vmax.f32 %v138, %v140
    %v142 = vsub.f32 %v134, %v120
    %v143 = vsub.f32 %v141, %v127
    %v144 = vadd.f32 %v142, 1e-06
    %v145 = vadd.f32 %v143, 1e-06
    %v146 = vrcp.pop %v144
    %v147 = vmul.f32 1.0, %v146
    %v148 = vrcp.pop %v145
    %v149 = vmul.f32 1.0, %v148
    %v150 = vsub.f32 %v21, %v29
    %v151 = vsub.f32 %v22, %v30
    %v152 = vsub.f32 %v23, %v31
    %v153 = vsub.f32 %v24, %v32
    %v154 = vsub.f32 %v25, %v33
    %v155 = vsub.f32 %v26, %v34
    %v156 = vsub.f32 %v27, %v35
    %v157 = vsub.f32 %v28, %v36
    %v158 = vmul.f32 %v150, %v150
    %v159 = vmul.f32 %v151, %v151
    %v160 = vmul.f32 %v152, %v152
    %v161 = vmul.f32 %v153, %v153
    %v162 = vmul.f32 %v154, %v154
    %v163 = vmul.f32 %v155, %v155
    %v164 = vmul.f32 %v156, %v156
    %v165 = vmul.f32 %v157, %v157
    %v166 = vsel %vm45, %v158, 0.0
    %v167 = vsel %vm45, %v159, 0.0
    %v168 = vadd.f32 %v166, %v167
    %v169 = vsel %vm45, %v160, 0.0
    %v170 = vadd.f32 %v168, %v169
    %v171 = vsel %vm45, %v161, 0.0
    %v172 = vadd.f32 %v170, %v171
    %v173 = vsel %vm45, %v162, 0.0
    %v174 = vsel %vm45, %v163, 0.0
    %v175 = vadd.f32 %v173, %v174
    %v176 = vsel %vm45, %v164, 0.0
    %v177 = vadd.f32 %v175, %v176
    %v178 = vsel %vm45, %v165, 0.0
    %v179 = vadd.f32 %v177, %v178
    %v180 = vmul.f32 %v147, %v147
    %v181 = vmul.f32 %v149, %v149
    %v182 = vmul.f32 %v172, %v180
    %v183 = vmul.f32 %v179, %v181
    %v184 = vld [vmem:[#allocation2] sm:$0x3]
    %v185 = vsel %vm45, %v112, 0.0
    %v186 = vsel %vm45, %v113, 0.0
    %v187 = vadd.f32 %v185, %v186
    %v188 = vadd.f32 %v184, %v187
    %189 = vst [vmem:[#allocation2] sm:$0x3] %v188
    %v190 = vld [vmem:[#allocation3] sm:$0x3]
    %v191 = vsel %vm45, %v182, 0.0
    %v192 = vsel %vm45, %v183, 0.0
    %v193 = vadd.f32 %v191, %v192
    %v194 = vadd.f32 %v190, %v193
    %195 = vst [vmem:[#allocation3] sm:$0x3] %v194
    // Predicated region
    $region14: #{cosine_mse_loss.1} parent=1 // pred_check
      %p196 = pneg %p15
    $region15: #{cosine_mse_loss.1} parent=1 // pred_check_branch
      %198 = sbr.rel (%p196) target = $region17
    $region16: #{cosine_mse_loss.1} parent=1 // pred_region
      %v199 = vld [vmem:[#allocation2] sm:$0x3]
      %v200 = vsel %vm45, %v199, 0.0
      %201 = vadd.xlane.f32.xlu0 %v200
      %v202 = vpop.xlane.xlu0 %201
      %v203 = vsel %vm45, %v202, 0.0
      %v204 = vrot.slane %v203, 4
      %v205 = vadd.f32 %v203, %v204
      %v206 = vrot.slane %v205, 2
      %v207 = vadd.f32 %v205, %v206
      %v208 = vrot.slane %v207, 1
      %v209 = vadd.f32 %v207, %v208
      %v210 = vld [vmem:[#allocation3] sm:$0x3]
      %v211 = vsel %vm45, %v210, 0.0
      %212 = vadd.xlane.f32.xlu0 %v211
      %v213 = vpop.xlane.xlu0 %212
      %v214 = vsel %vm45, %v213, 0.0
      %v215 = vrot.slane %v214, 4
      %v216 = vadd.f32 %v214, %v215
      %v217 = vrot.slane %v216, 2
      %v218 = vadd.f32 %v216, %v217
      %v219 = vrot.slane %v218, 1
      %v220 = vadd.f32 %v218, %v219
      %vm221 = vcmask 0
      %222 = vst.msk [vmem:[#allocation4] sm:$0x1] %vm221, %v209
      %223 = vst.msk [vmem:[#allocation6] sm:$0x1] %vm221, %v220
    $region17: #{cosine_mse_loss.1} parent=1 // pred_fallthru
      _
    // Predicated region
    $region18: #{cosine_mse_loss.1} parent=1 // pred_check
      _
    $region19: #{cosine_mse_loss.1} parent=1 // pred_check_branch
      %225 = sbr.rel (0) target = $region21
    $region20: #{cosine_mse_loss.1} parent=1 // pred_region
      %s227 = ssub.s32 16, 16
      %228 = vsyncadd [#allocation5], %s227
      %s230 = sshll.u32 [#allocation4], 4
      %s231 = int_to_ptr.vmem [resolvable:$true] %s230
      %233 = dma.vmem_to_hbm [thread:$0]  %s231, 16, %s2, [#allocation5]
    $region21: #{cosine_mse_loss.1} parent=1 // pred_fallthru
      _
    // Predicated region
    $region22: #{cosine_mse_loss.1} parent=1 // pred_check
      _
    $region23: #{cosine_mse_loss.1} parent=1 // pred_check_branch
      %235 = sbr.rel (0) target = $region25
    $region24: #{cosine_mse_loss.1} parent=1 // pred_region
      %s237 = ssub.s32 16, 16
      %238 = vsyncadd [#allocation7], %s237
      %s240 = sshll.u32 [#allocation6], 4
      %s241 = int_to_ptr.vmem [resolvable:$true] %s240
      %243 = dma.vmem_to_hbm [thread:$0]  %s241, 16, %s3, [#allocation7]
    $region25: #{cosine_mse_loss.1} parent=1 // pred_fallthru
      _
    // Predicated region
    $region26: #{cosine_mse_loss.1} parent=1 // pred_check
      _
    $region27: #{cosine_mse_loss.1} parent=1 // pred_check_branch
      %245 = sbr.rel (0) target = $region29
    $region28: #{cosine_mse_loss.1} parent=1 // pred_region
      %246 = dma.done [#allocation5], 16
    $region29: #{cosine_mse_loss.1} parent=1 // pred_fallthru
      _
    // Predicated region
    $region30: #{cosine_mse_loss.1} parent=1 // pred_check
      _
    $region31: #{cosine_mse_loss.1} parent=1 // pred_check_branch
      %248 = sbr.rel (0) target = $region33
    $region32: #{cosine_mse_loss.1} parent=1 // pred_region
      %249 = dma.done [#allocation7], 16
    $region33: #{cosine_mse_loss.1} parent=1 // pred_fallthru
      _
    %250 = vsyncpa [#allocation5], 1
    %251 = vsyncpa [#allocation7], 1

</llo_original>
